<compile_context>
chip_gen: v6e
topology: v6e:2x2x1
jax: 0.10.0
libtpu: 0.0.40
codegen_flags: <defaults>
</compile_context>

<pallas_src>
import functools

import jax
import jax.numpy as jnp
from jax import lax
from jax.experimental import pallas as pl
from jax.experimental.pallas import tpu as pltpu

LANE = 128


def _cdiv(a, b):
    return -(-a // b)


def _round_up(n, m):
    return _cdiv(n, m) * m


def _resident_spec(block_shape, index_map):
    """BlockSpec for a block whose index never changes: single-buffer it.

    Falls back to a default (double-buffered) spec if the installed jax does
    not accept the pipeline_mode kwarg.
    """
    try:
        return pl.BlockSpec(block_shape, index_map, pipeline_mode=pl.Buffered(1))
    except (TypeError, AttributeError):
        return pl.BlockSpec(block_shape, index_map)


def contrastive_kernel(x_ref, w1_ref, b1_ref, w2_ref, b2_ref, o_ref, acc_ref):
    """Grid = (batch tiles, K tiles). Accumulate x@W1 over K, epilogue at last K."""
    k = pl.program_id(1)

    @pl.when(k == 0)
    def _():
        acc_ref[...] = jnp.zeros_like(acc_ref)

    # encoder matmul: bf16 (or f32) MXU inputs, f32 accumulation.
    acc_ref[...] += jnp.dot(x_ref[...], w1_ref[...],
                            preferred_element_type=jnp.float32)

    @pl.when(k == pl.num_programs(1) - 1)
    def _():
        # f32 epilogue: bias + ReLU.
        h = jnp.maximum(acc_ref[...] + b1_ref[...], 0.0)
        # projector: Linear (MXU, f32 accumulation) + bias.
        z = jnp.dot(h.astype(w2_ref.dtype), w2_ref[...],
                    preferred_element_type=jnp.float32) + b2_ref[...]
        # F.normalize(z, dim=1): z / max(||z||,1e-12) == z * rsqrt(max(sumsq,1e-24)).
        sumsq = jnp.sum(z * z, axis=-1, keepdims=True)   # XLU row reduce
        inv = lax.rsqrt(jnp.maximum(sumsq, 1e-24))       # EUP rsqrt (no divide)
        o_ref[...] = (z * inv).astype(o_ref.dtype)


def contrastive_forward(x, w1, b1, w2, b2, *,
                        compute_dtype=jnp.bfloat16,
                        max_tile_b=1024,
                        max_tile_k=512):
    """x:(B,K), w1:(K,E), b1:(1,E), w2:(E,E), b2:(1,E) -> (B,E) f32."""
    B, K = x.shape
    K_w, E = w1.shape
    assert K_w == K and w2.shape == (E, E) and b1.shape == (1, E) and b2.shape == (1, E)

    mxu_dtype = jnp.dtype(compute_dtype)
    mxu_bytes = mxu_dtype.itemsize
    f32_bytes = 4
    # Sub-32-bit dtypes pack along sublanes: keep second-minor tile dims
    # 16-aligned for bf16, 8-aligned for f32.
    sub = 16 if mxu_bytes < 4 else 8

    # ---- K (contraction) tiling: lane-aligned, as few pad columns as possible.
    K_lane = _round_up(K, LANE)
    n_k = _cdiv(K_lane, max_tile_k)
    tile_k = _round_up(_cdiv(K_lane, n_k), LANE)
    K_pad = n_k * tile_k

    # ---- batch tiling: size tiles from the step count so padding stays tiny,
    # and use >=2 (even) steps when possible so v7x megacore splits the batch.
    n_b = _cdiv(B, max_tile_b)
    if B > sub:
        n_b = _round_up(max(n_b, 2), 2)
    tile_b = _round_up(_cdiv(B, n_b), sub)
    B_pad = n_b * tile_b

    # Zero-padding is exact (zeros contribute nothing to the dot products).
    # Pre-cast the MXU operands ONCE here (wrapper side), not in the kernel:
    # halves DMA bytes / VMEM for x and the weights. Biases stay f32.
    x_p = jnp.pad(x, ((0, B_pad - B), (0, K_pad - K))).astype(mxu_dtype)
    w1_p = jnp.pad(w1, ((0, K_pad - K), (0, 0))).astype(mxu_dtype)
    w2_p = w2.astype(mxu_dtype)

    # w1: resident (single buffer) if there is only one K tile, otherwise it
    # streams over K and keeps the default double-buffering.
    if n_k == 1:
        w1_spec = _resident_spec((tile_k, E), lambda i, k: (0, 0))
    else:
        w1_spec = pl.BlockSpec((tile_k, E), lambda i, k: (k, 0))

    # Explicit VMEM budget (double-buffered streaming tiles + resident blocks
    # + accumulator scratch) with headroom; never lowered below the 32 MiB
    # default, never raised above v7x's 64 MiB physical VMEM.
    vmem_bytes = (
        2 * tile_b * tile_k * mxu_bytes                     # x tiles
        + (2 if n_k > 1 else 1) * tile_k * E * mxu_bytes    # w1
        + E * E * mxu_bytes                                 # w2 (resident)
        + 2 * E * f32_bytes                                 # b1, b2
        + 2 * tile_b * E * f32_bytes                        # out tiles
        + tile_b * E * f32_bytes                            # f32 accumulator
    )
    vmem_limit = min(max(32 << 20, int(vmem_bytes * 1.25) + (2 << 20)), 64 << 20)

    out = pl.pallas_call(
        contrastive_kernel,
        out_shape=jax.ShapeDtypeStruct((B_pad, E), jnp.float32),
        grid_spec=pltpu.PrefetchScalarGridSpec(
            num_scalar_prefetch=0,
            grid=(n_b, n_k),                                   # reduction axis last
            in_specs=[
                pl.BlockSpec((tile_b, tile_k), lambda i, k: (i, k)),   # x streams
                w1_spec,
                _resident_spec((1, E), lambda i, k: (0, 0)),           # b1
                _resident_spec((E, E), lambda i, k: (0, 0)),           # w2
                _resident_spec((1, E), lambda i, k: (0, 0)),           # b2
            ],
            out_specs=pl.BlockSpec((tile_b, E), lambda i, k: (i, 0)),
            scratch_shapes=[pltpu.VMEM((tile_b, E), jnp.float32)],
        ),
        compiler_params=pltpu.CompilerParams(
            dimension_semantics=("parallel", "arbitrary"),  # megacore on batch axis
            vmem_limit_bytes=vmem_limit,
        ),
    )(x_p, w1_p, b1, w2_p, b2)

    return out[:B] if B_pad != B else out


def init_params(key, input_dim, embed_dim):
    # Deterministic init mimicking nn.Linear default (uniform +/- 1/sqrt(fan_in)).
    k1, k2, k3, k4 = jax.random.split(key, 4)
    lim1 = 1.0 / jnp.sqrt(input_dim)
    lim2 = 1.0 / jnp.sqrt(embed_dim)
    # stored as (in_features, out_features) so the kernel can do x @ W
    w1 = jax.random.uniform(k1, (input_dim, embed_dim), jnp.float32, -lim1, lim1)
    b1 = jax.random.uniform(k2, (1, embed_dim), jnp.float32, -lim1, lim1)
    w2 = jax.random.uniform(k3, (embed_dim, embed_dim), jnp.float32, -lim2, lim2)
    b2 = jax.random.uniform(k4, (1, embed_dim), jnp.float32, -lim2, lim2)
    return w1, b1, w2, b2


def reference(x, w1, b1, w2, b2):
    h = jnp.maximum(x @ w1 + b1, 0.0)
    z = h @ w2 + b2
    n = jnp.sqrt(jnp.sum(z * z, axis=-1, keepdims=True))
    return z / jnp.maximum(n, 1e-12)


if __name__ == "__main__":
    key = jax.random.PRNGKey(0)
    kx, kp = jax.random.split(key)

    batch = 8
    input_dim = 32   # stands in for X_scaled.shape[1]
    embed_dim = 128  # module default

    x = jax.random.normal(kx, (batch, input_dim), jnp.float32)
    w1, b1, w2, b2 = init_params(kp, input_dim, embed_dim)
    ref = reference(x, w1, b1, w2, b2)

    # f32 MXU inputs: matches nn.Linear numerics at tight tolerance.
    out_f32 = jax.block_until_ready(
        contrastive_forward(x, w1, b1, w2, b2, compute_dtype=jnp.float32))
    assert out_f32.shape == (batch, embed_dim)
    assert jnp.allclose(out_f32, ref, atol=1e-5, rtol=1e-5)

    # Default path: bf16 MXU inputs + f32 accumulation/epilogue (v5e/v6e/v7x).
    out_bf16 = jax.block_until_ready(contrastive_forward(x, w1, b1, w2, b2))
    assert out_bf16.shape == (batch, embed_dim)
    assert jnp.allclose(out_bf16, ref, atol=2e-2, rtol=2e-2)

    # Exercise the K-tiled accumulator + multi-batch-tile path at small scale
    # (input_dim > tile_k, batch not a tile multiple).
    kx2, kp2 = jax.random.split(jax.random.PRNGKey(1))
    x2 = jax.random.normal(kx2, (20, 300), jnp.float32)
    p2 = init_params(kp2, 300, embed_dim)
    out2 = jax.block_until_ready(contrastive_forward(x2, *p2, max_tile_k=128))
    assert out2.shape == (20, embed_dim)
    assert jnp.allclose(out2, reference(x2, *p2), atol=2e-2, rtol=2e-2)

    print("KERNEL_OK")
</pallas_src>

<mosaic_0001>
module attributes {stable_mosaic.version = 11 : i64} {
  func.func @contrastive_kernel(%arg0: i32, %arg1: i32, %arg2: memref<8x128xf32, #tpu.memory_space<vmem>>, %arg3: memref<128x128xf32, #tpu.memory_space<vmem>>, %arg4: memref<1x128xf32, #tpu.memory_space<vmem>>, %arg5: memref<128x128xf32, #tpu.memory_space<vmem>>, %arg6: memref<1x128xf32, #tpu.memory_space<vmem>>, %arg7: memref<8x128xf32, #tpu.memory_space<vmem>>, %arg8: memref<8x128xf32, #tpu.memory_space<vmem>>) attributes {dimension_semantics = [#tpu.dimension_semantics<parallel>, #tpu.dimension_semantics<arbitrary>], iteration_bounds = array<i64: 1, 1>, scalar_prefetch = 0 : i64, scratch_operands = 1 : i64, tpu.core_type = #tpu.core_type<tc>, window_params = [{transform_indices = @transform_0, window_bounds = array<i64: 8, 128>}, {pipeline_mode = #tpu.pipeline_mode<synchronous>, transform_indices = @transform_1, window_bounds = array<i64: 128, 128>}, {pipeline_mode = #tpu.pipeline_mode<synchronous>, transform_indices = @transform_2, window_bounds = array<i64: 1, 128>}, {pipeline_mode = #tpu.pipeline_mode<synchronous>, transform_indices = @transform_3, window_bounds = array<i64: 128, 128>}, {pipeline_mode = #tpu.pipeline_mode<synchronous>, transform_indices = @transform_4, window_bounds = array<i64: 1, 128>}, {transform_indices = @transform_5, window_bounds = array<i64: 8, 128>}]} {
    %c0_i32 = arith.constant 0 : i32
    %0 = arith.cmpi eq, %arg1, %c0_i32 : i32
    %1 = arith.extui %0 : i1 to i32
    %c0_i32_0 = arith.constant 0 : i32
    %2 = arith.cmpi ne, %1, %c0_i32_0 : i32
    scf.if %2 {
      %cst_10 = arith.constant 0.000000e+00 : f32
      %12 = vector.broadcast %cst_10 : f32 to vector<8x128xf32>
      %c0_11 = arith.constant 0 : index
      %c0_12 = arith.constant 0 : index
      %13 = vector.load %arg8[%c0_11, %c0_12] : memref<8x128xf32, #tpu.memory_space<vmem>>, vector<8x128xf32>
      tpu.vector_store %arg8[%c0_11, %c0_12], %12 {strides = array<i32>} : memref<8x128xf32, #tpu.memory_space<vmem>>, vector<8x128xf32>,
    } else {
    }
    %c0 = arith.constant 0 : index
    %c0_1 = arith.constant 0 : index
    %3 = vector.load %arg8[%c0, %c0_1] : memref<8x128xf32, #tpu.memory_space<vmem>>, vector<8x128xf32>
    %c0_2 = arith.constant 0 : index
    %c0_3 = arith.constant 0 : index
    %4 = vector.load %arg2[%c0_2, %c0_3] : memref<8x128xf32, #tpu.memory_space<vmem>>, vector<8x128xf32>
    %c0_4 = arith.constant 0 : index
    %c0_5 = arith.constant 0 : index
    %5 = vector.load %arg3[%c0_4, %c0_5] : memref<128x128xf32, #tpu.memory_space<vmem>>, vector<128x128xf32>
    %cst = arith.constant dense<0.000000e+00> : vector<8x128xf32>
    %6 = tpu.matmul %4, %5, %cst {dimension_numbers = #tpu.dot_dimension_numbers<[1], [0], [0], [1], [0, 0, 1, 1], [], []>} : vector<8x128xf32>, vector<128x128xf32>, vector<8x128xf32> -> vector<8x128xf32>
    %7 = arith.addf %3, %6 : vector<8x128xf32>
    %c0_6 = arith.constant 0 : index
    %c0_7 = arith.constant 0 : index
    %8 = vector.load %arg8[%c0_6, %c0_7] : memref<8x128xf32, #tpu.memory_space<vmem>>, vector<8x128xf32>
    tpu.vector_store %arg8[%c0_6, %c0_7], %7 {strides = array<i32>} : memref<8x128xf32, #tpu.memory_space<vmem>>, vector<8x128xf32>,
    %c0_i32_8 = arith.constant 0 : i32
    %9 = arith.cmpi eq, %arg1, %c0_i32_8 : i32
    %10 = arith.extui %9 : i1 to i32
    %c0_i32_9 = arith.constant 0 : i32
    %11 = arith.cmpi ne, %10, %c0_i32_9 : i32
    scf.if %11 {
      %c0_10 = arith.constant 0 : index
      %c0_11 = arith.constant 0 : index
      %12 = vector.load %arg8[%c0_10, %c0_11] : memref<8x128xf32, #tpu.memory_space<vmem>>, vector<8x128xf32>
      %c0_12 = arith.constant 0 : index
      %c0_13 = arith.constant 0 : index
      %13 = vector.load %arg4[%c0_12, %c0_13] : memref<1x128xf32, #tpu.memory_space<vmem>>, vector<1x128xf32>
      %14 = vector.broadcast %13 : vector<1x128xf32> to vector<8x128xf32>
      %15 = arith.addf %12, %14 : vector<8x128xf32>
      %cst_14 = arith.constant 0.000000e+00 : f32
      %16 = vector.broadcast %cst_14 : f32 to vector<8x128xf32>
      %17 = arith.maximumf %15, %16 : vector<8x128xf32>
      %c0_15 = arith.constant 0 : index
      %c0_16 = arith.constant 0 : index
      %18 = vector.load %arg5[%c0_15, %c0_16] : memref<128x128xf32, #tpu.memory_space<vmem>>, vector<128x128xf32>
      %cst_17 = arith.constant dense<0.000000e+00> : vector<8x128xf32>
      %19 = tpu.matmul %17, %18, %cst_17 {dimension_numbers = #tpu.dot_dimension_numbers<[1], [0], [0], [1], [0, 0, 1, 1], [], []>} : vector<8x128xf32>, vector<128x128xf32>, vector<8x128xf32> -> vector<8x128xf32>
      %c0_18 = arith.constant 0 : index
      %c0_19 = arith.constant 0 : index
      %20 = vector.load %arg6[%c0_18, %c0_19] : memref<1x128xf32, #tpu.memory_space<vmem>>, vector<1x128xf32>
      %21 = vector.broadcast %20 : vector<1x128xf32> to vector<8x128xf32>
      %22 = arith.addf %19, %21 : vector<8x128xf32>
      %23 = arith.mulf %22, %22 : vector<8x128xf32>
      %cst_20 = arith.constant dense<0.000000e+00> : vector<8xf32>
      %24 = vector.multi_reduction <add>, %23, %cst_20 [1] : vector<8x128xf32> to vector<8xf32>
      %25 = vector.shape_cast %24 : vector<8xf32> to vector<8x1xf32>
      %cst_21 = arith.constant 1.000000e-24 : f32
      %26 = vector.broadcast %cst_21 : f32 to vector<8x1xf32>
      %27 = arith.maximumf %25, %26 : vector<8x1xf32>
      %28 = math.rsqrt %27 : vector<8x1xf32>
      %29 = vector.broadcast %28 : vector<8x1xf32> to vector<8x128xf32>
      %30 = arith.mulf %22, %29 : vector<8x128xf32>
      %c0_22 = arith.constant 0 : index
      %c0_23 = arith.constant 0 : index
      %31 = vector.load %arg7[%c0_22, %c0_23] : memref<8x128xf32, #tpu.memory_space<vmem>>, vector<8x128xf32>
      tpu.vector_store %arg7[%c0_22, %c0_23], %30 {strides = array<i32>} : memref<8x128xf32, #tpu.memory_space<vmem>>, vector<8x128xf32>,
    } else {
    }
    return
  }
  func.func @transform_0(%arg0: i32, %arg1: i32) -> (i32, i32) {
    %c0_i32 = arith.constant 0 : i32
    return %arg0, %arg1 : i32, i32
  }
  func.func @transform_1(%arg0: i32, %arg1: i32) -> (i32, i32) {
    %c0_i32 = arith.constant 0 : i32
    %c0_i32_0 = arith.constant 0 : i32
    %c0_i32_1 = arith.constant 0 : i32
    return %c0_i32, %c0_i32_0 : i32, i32
  }
  func.func @transform_2(%arg0: i32, %arg1: i32) -> (i32, i32) {
    %c0_i32 = arith.constant 0 : i32
    %c0_i32_0 = arith.constant 0 : i32
    %c0_i32_1 = arith.constant 0 : i32
    return %c0_i32, %c0_i32_0 : i32, i32
  }
  func.func @transform_3(%arg0: i32, %arg1: i32) -> (i32, i32) {
    %c0_i32 = arith.constant 0 : i32
    %c0_i32_0 = arith.constant 0 : i32
    %c0_i32_1 = arith.constant 0 : i32
    return %c0_i32, %c0_i32_0 : i32, i32
  }
  func.func @transform_4(%arg0: i32, %arg1: i32) -> (i32, i32) {
    %c0_i32 = arith.constant 0 : i32
    %c0_i32_0 = arith.constant 0 : i32
    %c0_i32_1 = arith.constant 0 : i32
    return %c0_i32, %c0_i32_0 : i32, i32
  }
  func.func @transform_5(%arg0: i32, %arg1: i32) -> (i32, i32) {
    %c0_i32 = arith.constant 0 : i32
    %c0_i32_0 = arith.constant 0 : i32
    return %arg0, %c0_i32 : i32, i32
  }
}

</mosaic_0001>

<llo_original>
// kernel: tpu_custom_call.1
$region0: #{tpu_custom_call.1}
  #allocation0 [shape = 'u32[]', space=smem, size = 0x4, offset = 0x4, fixed_abs, tag = 'smem constant byte address 0x4 - core index']
  #allocation1 [shape = 'u32[144,128]{1,0:T(1,128)}', space=vmem, size = 0x12000, scoped, tag = 'internal scratch']
  #allocation2 [shape = 'f32[8,128]{1,0:T(8,128)}', space=vmem, size = 0x1000, scoped, tag = 'scratch operand']
  %s0 = inlined_call_operand.hbm [shape: f32[8,128], index: 0, kind: input, shape index: {}]
  %s1 = inlined_call_operand.hbm [shape: f32[128,128], index: 1, kind: input, shape index: {}]
  %s2 = inlined_call_operand.vmem [shape: f32[1,128], index: 2, kind: input, shape index: {}]
  %s3 = inlined_call_operand.hbm [shape: f32[128,128], index: 3, kind: input, shape index: {}]
  %s4 = inlined_call_operand.vmem [shape: f32[1,128], index: 4, kind: input, shape index: {}]
  %s5 = inlined_call_operand.hbm [shape: f32[8,128], index: 5, kind: output, shape index: {}]
  %s6 = sld [smem:[#allocation0]]
  $region50: #{tpu_custom_call.1} parent=0
    _
  %s8 = ssub.s32 1, %s6
  %s9 = scalar_select 0, %s8, %s6
  $region1: #{tpu_custom_call.1} parent=0
    #allocation3 [shape = 'u8[4096]{0}', space=vmem, size = 0x1000, scoped, tag = 'input window, operand 0, single buffered']
    #allocation4 [shape = 's32[1]{0}', space=sflag, size = 0x4, scoped, tag = 'scoped memory for tpu_custom_call.1']
    #allocation5 [shape = 's32[1]{0}', space=sflag, size = 0x4, scoped, tag = 'scoped memory for tpu_custom_call.1']
    #allocation6 [shape = 'u8[65536]{0}', space=vmem, size = 0x10000, scoped, tag = 'input window, operand 1, single buffered']
    #allocation7 [shape = 's32[1]{0}', space=sflag, size = 0x4, scoped, tag = 'scoped memory for tpu_custom_call.1']
    #allocation8 [shape = 'u8[65536]{0}', space=vmem, size = 0x10000, scoped, tag = 'input window, operand 3, single buffered']
    #allocation9 [shape = 'u8[4096]{0}', space=vmem, size = 0x1000, scoped, tag = 'output window, operand 0, single buffered']
    %10 = vsyncpa [#allocation4], 0
    %11 = vsyncpa [#allocation7], 0
    %12 = vsyncpa [#allocation5], 0
    // Predicated region
    $region2: #{tpu_custom_call.1} parent=1 // pred_check
      _
    $region3: #{tpu_custom_call.1} parent=1 // pred_check_branch
      %14 = sbr.rel (0) target = $region5
    $region4: #{tpu_custom_call.1} parent=1 // pred_region
      %s16 = ssub.s32 128, 128
      %17 = vsyncadd [#allocation4], %s16
      %s19 = sshll.u32 [#allocation3], 4
      %s20 = int_to_ptr.vmem [resolvable:$true] %s19
      %22 = dma.hbm_to_vmem [thread:$0]  %s0, 128, %s20, [#allocation4]
    $region5: #{tpu_custom_call.1} parent=1 // pred_fallthru
      _
    // Predicated region
    $region6: #{tpu_custom_call.1} parent=1 // pred_check
      _
    $region7: #{tpu_custom_call.1} parent=1 // pred_check_branch
      %24 = sbr.rel (0) target = $region9
    $region8: #{tpu_custom_call.1} parent=1 // pred_region
      %s26 = ssub.s32 2048, 2048
      %27 = vsyncadd [#allocation7], %s26
      %s28 = sshll.u32 [#allocation6], 4
      %s29 = int_to_ptr.vmem [resolvable:$true] %s28
      %34 = dma.hbm_to_vmem [thread:$0]  %s1, 2048, %s29, [#allocation7], 128, 128, 8
    $region9: #{tpu_custom_call.1} parent=1 // pred_fallthru
      _
    // Predicated region
    $region10: #{tpu_custom_call.1} parent=1 // pred_check
      _
    $region11: #{tpu_custom_call.1} parent=1 // pred_check_branch
      %36 = sbr.rel (0) target = $region13
    $region12: #{tpu_custom_call.1} parent=1 // pred_region
      _
    $region13: #{tpu_custom_call.1} parent=1 // pred_fallthru
      _
    // Predicated region
    $region14: #{tpu_custom_call.1} parent=1 // pred_check
      _
    $region15: #{tpu_custom_call.1} parent=1 // pred_check_branch
      %38 = sbr.rel (0) target = $region17
    $region16: #{tpu_custom_call.1} parent=1 // pred_region
      %s40 = ssub.s32 2048, 2048
      %41 = vsyncadd [#allocation7], %s40
      %s42 = sshll.u32 [#allocation8], 4
      %s43 = int_to_ptr.vmem [resolvable:$true] %s42
      %48 = dma.hbm_to_vmem [thread:$0]  %s3, 2048, %s43, [#allocation7], 128, 128, 8
    $region17: #{tpu_custom_call.1} parent=1 // pred_fallthru
      _
    // Predicated region
    $region18: #{tpu_custom_call.1} parent=1 // pred_check
      _
    $region19: #{tpu_custom_call.1} parent=1 // pred_check_branch
      %50 = sbr.rel (0) target = $region21
    $region20: #{tpu_custom_call.1} parent=1 // pred_region
      _
    $region21: #{tpu_custom_call.1} parent=1 // pred_fallthru
      _
    // Predicated region
    $region22: #{tpu_custom_call.1} parent=1 // pred_check
      _
    $region23: #{tpu_custom_call.1} parent=1 // pred_check_branch
      %52 = sbr.rel (0) target = $region25
    $region24: #{tpu_custom_call.1} parent=1 // pred_region
      %53 = dma.done [#allocation4], 128
    $region25: #{tpu_custom_call.1} parent=1 // pred_fallthru
      _
    // Predicated region
    $region26: #{tpu_custom_call.1} parent=1 // pred_check
      _
    $region27: #{tpu_custom_call.1} parent=1 // pred_check_branch
      %55 = sbr.rel (0) target = $region29
    $region28: #{tpu_custom_call.1} parent=1 // pred_region
      %56 = dma.done [#allocation7], 2048
    $region29: #{tpu_custom_call.1} parent=1 // pred_fallthru
      _
    // Predicated region
    $region30: #{tpu_custom_call.1} parent=1 // pred_check
      _
    $region31: #{tpu_custom_call.1} parent=1 // pred_check_branch
      %58 = sbr.rel (0) target = $region33
    $region32: #{tpu_custom_call.1} parent=1 // pred_region
      %59 = dma.done [#allocation7], 2048
    $region33: #{tpu_custom_call.1} parent=1 // pred_fallthru
      _
    %p60 = scmp.eq.s32.totalorder 0, 0
    // Predicated region
    $region34: #{tpu_custom_call.1} parent=1 // pred_check
      %p61 = pneg %p60
    $region35: #{tpu_custom_call.1} parent=1 // pred_check_branch
      %63 = sbr.rel (%p61) target = $region37
    $region36: #{tpu_custom_call.1} parent=1 // pred_region
      %64 = vst [vmem:[#allocation2] sm:$0xff] 0.0
    $region37: #{tpu_custom_call.1} parent=1 // pred_fallthru
      _
    %v65 = vld [vmem:[#allocation2] sm:$0xff]
    %v66 = vld [vmem:[#allocation3] sm:$0xff]
    %v67 = vld [vmem:[#allocation6] sm:$0xff]
    %v68 = vld [vmem:[#allocation6 + $0x8] sm:$0xff]
    %v69 = vld [vmem:[#allocation6 + $0x10] sm:$0xff]
    %v70 = vld [vmem:[#allocation6 + $0x18] sm:$0xff]
    %v71 = vld [vmem:[#allocation6 + $0x20] sm:$0xff]
    %v72 = vld [vmem:[#allocation6 + $0x28] sm:$0xff]
    %v73 = vld [vmem:[#allocation6 + $0x30] sm:$0xff]
    %v74 = vld [vmem:[#allocation6 + $0x38] sm:$0xff]
    %v75 = vld [vmem:[#allocation6 + $0x40] sm:$0xff]
    %v76 = vld [vmem:[#allocation6 + $0x48] sm:$0xff]
    %v77 = vld [vmem:[#allocation6 + $0x50] sm:$0xff]
    %v78 = vld [vmem:[#allocation6 + $0x58] sm:$0xff]
    %v79 = vld [vmem:[#allocation6 + $0x60] sm:$0xff]
    %v80 = vld [vmem:[#allocation6 + $0x68] sm:$0xff]
    %v81 = vld [vmem:[#allocation6 + $0x70] sm:$0xff]
    %v82 = vld [vmem:[#allocation6 + $0x78] sm:$0xff]
    %83 = vmatprep.subr.mxu0 0.0
    %84 = vmatpush1.msra.mxu0 %v82
    %85 = vmatprep.subr.mxu0 0.0
    %86 = vmatpush1.msra.mxu0 %v81
    %87 = vmatprep.subr.mxu0 0.0
    %88 = vmatpush1.msra.mxu0 %v80
    %89 = vmatprep.subr.mxu0 0.0
    %90 = vmatpush1.msra.mxu0 %v79
    %91 = vmatprep.subr.mxu0 0.0
    %92 = vmatpush1.msra.mxu0 %v78
    %93 = vmatprep.subr.mxu0 0.0
    %94 = vmatpush1.msra.mxu0 %v77
    %95 = vmatprep.subr.mxu0 0.0
    %96 = vmatpush1.msra.mxu0 %v76
    %97 = vmatprep.subr.mxu0 0.0
    %98 = vmatpush1.msra.mxu0 %v75
    %99 = vmatprep.subr.mxu0 0.0
    %100 = vmatpush1.msra.mxu0 %v74
    %101 = vmatprep.subr.mxu0 0.0
    %102 = vmatpush1.msra.mxu0 %v73
    %103 = vmatprep.subr.mxu0 0.0
    %104 = vmatpush1.msra.mxu0 %v72
    %105 = vmatprep.subr.mxu0 0.0
    %106 = vmatpush1.msra.mxu0 %v71
    %107 = vmatprep.subr.mxu0 0.0
    %108 = vmatpush1.msra.mxu0 %v70
    %109 = vmatprep.subr.mxu0 0.0
    %110 = vmatpush1.msra.mxu0 %v69
    %111 = vmatprep.subr.mxu0 0.0
    %112 = vmatpush1.msra.mxu0 %v68
    %113 = vmatprep.subr.mxu0 0.0
    %114 = vmatpush1.msra.mxu0 %v67
    %115 = vmatprep.subr.mxu0 0.0
    %116 = vmatpush2.msra.mxu0 0.0
    %117 = vmatprep.subr.mxu0 0.0
    %118 = vmatpush2.msra.mxu0 0.0
    %119 = vmatprep.subr.mxu0 0.0
    %120 = vmatpush2.msra.mxu0 0.0
    %121 = vmatprep.subr.mxu0 0.0
    %122 = vmatpush2.msra.mxu0 0.0
    %123 = vmatprep.subr.mxu0 0.0
    %124 = vmatpush2.msra.mxu0 0.0
    %125 = vmatprep.subr.mxu0 0.0
    %126 = vmatpush2.msra.mxu0 0.0
    %127 = vmatprep.subr.mxu0 0.0
    %128 = vmatpush2.msra.mxu0 0.0
    %129 = vmatprep.subr.mxu0 0.0
    %130 = vmatpush2.msra.mxu0 0.0
    %131 = vmatprep.subr.mxu0 0.0
    %132 = vmatpush2.msra.mxu0 0.0
    %133 = vmatprep.subr.mxu0 0.0
    %134 = vmatpush2.msra.mxu0 0.0
    %135 = vmatprep.subr.mxu0 0.0
    %136 = vmatpush2.msra.mxu0 0.0
    %137 = vmatprep.subr.mxu0 0.0
    %138 = vmatpush2.msra.mxu0 0.0
    %139 = vmatprep.subr.mxu0 0.0
    %140 = vmatpush2.msra.mxu0 0.0
    %141 = vmatprep.subr.mxu0 0.0
    %142 = vmatpush2.msra.mxu0 0.0
    %143 = vmatprep.subr.mxu0 0.0
    %144 = vmatpush2.msra.mxu0 0.0
    %145 = vmatprep.subr.mxu0 0.0
    %146 = vmatpush2.msra.mxu0 0.0
    %147 = vmatprep.mubr.f32.mxu0 0.0
    %148 = vmatmul.mubr.f32.gmra.mxu0 %v66
    %v149 = vpop.f32.mrf.mxu0
    %v150 = vadd.f32 0.0, %v149
    %v151 = vpop.f32.mrf.mxu0
    %152 = vdwg.mxu0
    %v153 = vadd.f32 %v65, %v150
    %154 = vst [vmem:[#allocation2] sm:$0xff] %v153
    // Predicated region
    $region38: #{tpu_custom_call.1} parent=1 // pred_check
      %p155 = pneg %p60
    $region39: #{tpu_custom_call.1} parent=1 // pred_check_branch
      %157 = sbr.rel (%p155) target = $region41
    $region40: #{tpu_custom_call.1} parent=1 // pred_region
      %v158 = vld [vmem:[#allocation2] sm:$0xff]
      %v159 = vld [vmem:[%s2] sm:$0x1]
      %v161 = vlaneseq
      %v162 = vshrl.u32 %v161, 7
      %v163 = vsub.s32 0, %v162
      %v164 = vrot.slane %v159, %v163
      %v166 = vadd.f32 %v158, %v164
      %v167 = vmax.f32 %v166, 0.0
      %v168 = vld [vmem:[#allocation8] sm:$0xff]
      %v169 = vld [vmem:[#allocation8 + $0x8] sm:$0xff]
      %v170 = vld [vmem:[#allocation8 + $0x10] sm:$0xff]
      %v171 = vld [vmem:[#allocation8 + $0x18] sm:$0xff]
      %v172 = vld [vmem:[#allocation8 + $0x20] sm:$0xff]
      %v173 = vld [vmem:[#allocation8 + $0x28] sm:$0xff]
      %v174 = vld [vmem:[#allocation8 + $0x30] sm:$0xff]
      %v175 = vld [vmem:[#allocation8 + $0x38] sm:$0xff]
      %v176 = vld [vmem:[#allocation8 + $0x40] sm:$0xff]
      %v177 = vld [vmem:[#allocation8 + $0x48] sm:$0xff]
      %v178 = vld [vmem:[#allocation8 + $0x50] sm:$0xff]
      %v179 = vld [vmem:[#allocation8 + $0x58] sm:$0xff]
      %v180 = vld [vmem:[#allocation8 + $0x60] sm:$0xff]
      %v181 = vld [vmem:[#allocation8 + $0x68] sm:$0xff]
      %v182 = vld [vmem:[#allocation8 + $0x70] sm:$0xff]
      %v183 = vld [vmem:[#allocation8 + $0x78] sm:$0xff]
      %v184 = vld [vmem:[%s4] sm:$0x1]
      %v186 = vlaneseq
      %v187 = vshrl.u32 %v186, 7
      %v188 = vsub.s32 0, %v187
      %v189 = vrot.slane %v184, %v188
      %191 = vmatprep.subr.mxu0 0.0
      %192 = vmatpush1.msra.mxu0 %v183
      %193 = vmatprep.subr.mxu0 0.0
      %194 = vmatpush1.msra.mxu0 %v182
      %195 = vmatprep.subr.mxu0 0.0
      %196 = vmatpush1.msra.mxu0 %v181
      %197 = vmatprep.subr.mxu0 0.0
      %198 = vmatpush1.msra.mxu0 %v180
      %199 = vmatprep.subr.mxu0 0.0
      %200 = vmatpush1.msra.mxu0 %v179
      %201 = vmatprep.subr.mxu0 0.0
      %202 = vmatpush1.msra.mxu0 %v178
      %203 = vmatprep.subr.mxu0 0.0
      %204 = vmatpush1.msra.mxu0 %v177
      %205 = vmatprep.subr.mxu0 0.0
      %206 = vmatpush1.msra.mxu0 %v176
      %207 = vmatprep.subr.mxu0 0.0
      %208 = vmatpush1.msra.mxu0 %v175
      %209 = vmatprep.subr.mxu0 0.0
      %210 = vmatpush1.msra.mxu0 %v174
      %211 = vmatprep.subr.mxu0 0.0
      %212 = vmatpush1.msra.mxu0 %v173
      %213 = vmatprep.subr.mxu0 0.0
      %214 = vmatpush1.msra.mxu0 %v172
      %215 = vmatprep.subr.mxu0 0.0
      %216 = vmatpush1.msra.mxu0 %v171
      %217 = vmatprep.subr.mxu0 0.0
      %218 = vmatpush1.msra.mxu0 %v170
      %219 = vmatprep.subr.mxu0 0.0
      %220 = vmatpush1.msra.mxu0 %v169
      %221 = vmatprep.subr.mxu0 0.0
      %222 = vmatpush1.msra.mxu0 %v168
      %223 = vmatprep.subr.mxu0 0.0
      %224 = vmatpush2.msra.mxu0 0.0
      %225 = vmatprep.subr.mxu0 0.0
      %226 = vmatpush2.msra.mxu0 0.0
      %227 = vmatprep.subr.mxu0 0.0
      %228 = vmatpush2.msra.mxu0 0.0
      %229 = vmatprep.subr.mxu0 0.0
      %230 = vmatpush2.msra.mxu0 0.0
      %231 = vmatprep.subr.mxu0 0.0
      %232 = vmatpush2.msra.mxu0 0.0
      %233 = vmatprep.subr.mxu0 0.0
      %234 = vmatpush2.msra.mxu0 0.0
      %235 = vmatprep.subr.mxu0 0.0
      %236 = vmatpush2.msra.mxu0 0.0
      %237 = vmatprep.subr.mxu0 0.0
      %238 = vmatpush2.msra.mxu0 0.0
      %239 = vmatprep.subr.mxu0 0.0
      %240 = vmatpush2.msra.mxu0 0.0
      %241 = vmatprep.subr.mxu0 0.0
      %242 = vmatpush2.msra.mxu0 0.0
      %243 = vmatprep.subr.mxu0 0.0
      %244 = vmatpush2.msra.mxu0 0.0
      %245 = vmatprep.subr.mxu0 0.0
      %246 = vmatpush2.msra.mxu0 0.0
      %247 = vmatprep.subr.mxu0 0.0
      %248 = vmatpush2.msra.mxu0 0.0
      %249 = vmatprep.subr.mxu0 0.0
      %250 = vmatpush2.msra.mxu0 0.0
      %251 = vmatprep.subr.mxu0 0.0
      %252 = vmatpush2.msra.mxu0 0.0
      %253 = vmatprep.subr.mxu0 0.0
      %254 = vmatpush2.msra.mxu0 0.0
      %255 = vmatprep.mubr.f32.mxu0 0.0
      %256 = vmatmul.mubr.f32.gmra.mxu0 %v167
      %v257 = vpop.f32.mrf.mxu0
      %v258 = vadd.f32 %v189, %v257
      %v259 = vpop.f32.mrf.mxu0
      %260 = vdwg.mxu0
      %v261 = vmul.f32 %v258, %v258
      %262 = vadd.xlane.f32.xlu0 %v261
      %v263 = vpop.xlane.xlu0 %262
      %v264 = vmax.f32 %v263, 1e-24
      %v265 = vrsqrt.pop %v264
      %v266 = vmul.f32 %v258, %v265
      %267 = vst [vmem:[#allocation9] sm:$0xff] %v266
    $region41: #{tpu_custom_call.1} parent=1 // pred_fallthru
      _
    // Predicated region
    $region42: #{tpu_custom_call.1} parent=1 // pred_check
      _
    $region43: #{tpu_custom_call.1} parent=1 // pred_check_branch
      %269 = sbr.rel (0) target = $region45
    $region44: #{tpu_custom_call.1} parent=1 // pred_region
      %s271 = ssub.s32 128, 128
      %272 = vsyncadd [#allocation5], %s271
      %s274 = sshll.u32 [#allocation9], 4
      %s275 = int_to_ptr.vmem [resolvable:$true] %s274
      %277 = dma.vmem_to_hbm [thread:$0]  %s275, 128, %s5, [#allocation5]
    $region45: #{tpu_custom_call.1} parent=1 // pred_fallthru
      _
    // Predicated region
    $region46: #{tpu_custom_call.1} parent=1 // pred_check
      _
    $region47: #{tpu_custom_call.1} parent=1 // pred_check_branch
      %279 = sbr.rel (0) target = $region49
    $region48: #{tpu_custom_call.1} parent=1 // pred_region
      %280 = dma.done [#allocation5], 128
    $region49: #{tpu_custom_call.1} parent=1 // pred_fallthru
      _
    %281 = vsyncpa [#allocation4], 1
    %282 = vsyncpa [#allocation7], 1
    %283 = vsyncpa [#allocation5], 1

</llo_original>
